<compile_context>
chip_gen: v7x
topology: tpu7x:2x2x1
jax: 0.10.0
libtpu: 0.0.40
codegen_flags: <defaults>
</compile_context>

<pallas_src>
import math
from functools import reduce

import jax
import jax.numpy as jnp
from jax.experimental import pallas as pl
from jax.experimental.pallas import tpu as pltpu

_LANE = 128
_BLOCK_BYTES = 2 * 1024 * 1024   # per-block budget; ~4x live w/ double buffering
_FUSE_BYTES = 2 * 1024 * 1024    # fuse views into one call below this per-view size


def _sublane(dtype):
    return {4: 8, 2: 16, 1: 32}.get(jnp.dtype(dtype).itemsize, 8)


def _round_down(x, unit):
    return (x // unit) * unit


def _largest_divisor(n, unit, cap):
    """Largest d with d % unit == 0, n % d == 0, d <= cap (None if impossible)."""
    if n <= 0 or n % unit:
        return None
    best = None
    m = n // unit
    i = 1
    while i * i <= m:
        if m % i == 0:
            for q in (i, m // i):
                d = q * unit
                if d <= cap and (best is None or d > best):
                    best = d
        i += 1
    return best


def _pick_blocks(R, L, g, itemsize, sub):
    """(blk_r, blk_l) for the lane-aligned fast path (requires g % 128 == 0)."""
    # Rows: keep the full row extent unless even one 128-lane column slab busts
    # the budget (then tile rows on sublane-aligned divisors).
    blk_r = R
    if R * _LANE * itemsize > _BLOCK_BYTES and R % sub == 0:
        blk_r = _largest_divisor(
            R, sub, max(sub, _BLOCK_BYTES // (_LANE * itemsize))) or R
    # Lanes: budget cap + aim for >=4 blocks so the pipeline overlaps, but do
    # not shrink below 512 lanes just to raise the block count (per-step
    # overhead matters on v5e).
    cap_budget = max(_LANE, _round_down(_BLOCK_BYTES // (blk_r * itemsize), _LANE))
    cap_pipe = max(_LANE, _round_down(L // 4, _LANE))
    cap = max(_LANE, min(cap_budget, max(cap_pipe, 4 * _LANE)))
    blk_l = _largest_divisor(g, _LANE, cap)   # 128 always qualifies when g%128==0
    return blk_r, blk_l


def _copy_kernel(x_ref, o_ref):
    o_ref[...] = x_ref[...]


def _copy_kernel_prefetch(off_ref, x_ref, o_ref):
    del off_ref                      # consumed by the index_maps only
    o_ref[...] = x_ref[...]


def _fused_fast(x2d, offsets, L, blk_r, blk_l):
    """All views in one call: SMEM offset table drives the input index_map."""
    R = x2d.shape[0]
    V = len(offsets)
    nr, ns = R // blk_r, L // blk_l
    off_blocks = jnp.asarray([o // blk_l for o in offsets], dtype=jnp.int32)
    grid_spec = pltpu.PrefetchScalarGridSpec(
        num_scalar_prefetch=1,
        grid=(V, nr, ns),
        in_specs=[pl.BlockSpec((blk_r, blk_l),
                               lambda v, r, s, off: (r, off[v] + s))],
        out_specs=pl.BlockSpec((None, blk_r, blk_l),
                               lambda v, r, s, off: (v, r, s)),
    )
    return pl.pallas_call(
        _copy_kernel_prefetch,
        out_shape=jax.ShapeDtypeStruct((V, R, L), x2d.dtype),
        grid_spec=grid_spec,
        compiler_params=pltpu.CompilerParams(
            dimension_semantics=("parallel", "parallel", "parallel")),
    )(off_blocks, x2d)


def _view_fast(x2d, offset, L, blk_r, blk_l):
    """One lane-aligned crop, written straight into its own buffer."""
    R = x2d.shape[0]
    nr, ns = R // blk_r, L // blk_l
    base = offset // blk_l
    return pl.pallas_call(
        _copy_kernel,
        out_shape=jax.ShapeDtypeStruct((R, L), x2d.dtype),
        grid=(nr, ns),
        in_specs=[pl.BlockSpec((blk_r, blk_l), lambda r, s: (r, base + s))],
        out_specs=pl.BlockSpec((blk_r, blk_l), lambda r, s: (r, s)),
        compiler_params=pltpu.CompilerParams(
            dimension_semantics=("parallel", "parallel")),
    )(x2d)


def _view_fallback(x2d, offset, L, sub):
    """Lane-misaligned crop: tile rows over the grid, static lane slice."""
    R, N = x2d.shape
    itemsize = jnp.dtype(x2d.dtype).itemsize
    blk_r = R
    if R % sub == 0:
        cap_budget = max(sub, _BLOCK_BYTES // (N * itemsize))
        cap_pipe = max(sub, _round_down(R // 4, sub))
        cap = max(sub, min(cap_budget, max(cap_pipe, 8 * sub)))
        blk_r = _largest_divisor(R, sub, cap) or R
    nr = R // blk_r

    def slice_kernel(x_ref, o_ref):
        # offset / L are Python ints -> static slice, no dynamic pl.ds needed.
        o_ref[...] = x_ref[:, offset:offset + L]

    return pl.pallas_call(
        slice_kernel,
        out_shape=jax.ShapeDtypeStruct((R, L), x2d.dtype),
        grid=(nr,),
        in_specs=[pl.BlockSpec((blk_r, N), lambda r: (r, 0))],
        out_specs=pl.BlockSpec((blk_r, L), lambda r: (r, 0)),
        compiler_params=pltpu.CompilerParams(
            dimension_semantics=("parallel",)),
    )(x2d)


def multi_crop(img, n_views, overlap=False, horizontal=True, valid_views=None,
               fuse=None):
    """Pallas equivalent of MultiCrop.forward. Returns a list of crops."""
    C, H, W = img.shape
    n, step = (n_views + 1, 2) if overlap else (n_views, 1)
    sep = math.floor((H if horizontal else W) / n)
    length = step * sep

    views = list(range(n_views)) if valid_views is None else list(valid_views)
    if not views:
        return []

    if horizontal:
        x2d = img.reshape(C, H * W)            # crop axis H -> contiguous lanes
        unit = W
        out_view = lambda c2d: c2d.reshape(C, length, W)
        empty = (C, 0, W)
    else:
        x2d = img.reshape(C * H, W)            # crop axis W is already the lane axis
        unit = 1
        out_view = lambda c2d: c2d.reshape(C, H, length)
        empty = (C, H, 0)

    if length <= 0:                             # n_views/overlap exceeds image extent
        return [jnp.zeros(empty, img.dtype) for _ in views]

    L = length * unit
    offsets = [v * sep * unit for v in views]
    R = x2d.shape[0]
    itemsize = jnp.dtype(img.dtype).itemsize
    sub = _sublane(img.dtype)

    g = reduce(math.gcd, offsets, L)            # gcd(0, L) == L: no view-0 special case
    aligned = (g % _LANE == 0)

    if fuse is None:
        fuse = (R * L * itemsize) <= _FUSE_BYTES
    fuse = fuse and aligned and len(views) > 1

    if fuse:
        blk_r, blk_l = _pick_blocks(R, L, g, itemsize, sub)
        stacked = _fused_fast(x2d, offsets, L, blk_r, blk_l)
        crops = [stacked[i] for i in range(len(views))]
    elif aligned:
        blk_r, blk_l = _pick_blocks(R, L, g, itemsize, sub)
        crops = [_view_fast(x2d, off, L, blk_r, blk_l) for off in offsets]
    else:
        crops = [_view_fallback(x2d, off, L, sub) for off in offsets]

    return [out_view(c) for c in crops]


def _reference_multi_crop(img, n_views, overlap=False, horizontal=True,
                          valid_views=None):
    """Plain-JAX port of the PyTorch forward, for correctness checking."""
    _, H, W = img.shape
    n, step = (n_views + 1, 2) if overlap else (n_views, 1)
    imgs = []
    if horizontal:
        sep = math.floor(H / n)
        for v in range(n_views):
            imgs.append(img[:, v * sep:(v + step) * sep, :])
    else:
        sep = math.floor(W / n)
        for v in range(n_views):
            imgs.append(img[:, :, v * sep:(v + step) * sep])
    return imgs if valid_views is None else [imgs[i] for i in valid_views]


if __name__ == "__main__":
    key = jax.random.PRNGKey(0)
    k1, k2 = jax.random.split(key)
    img_small = jax.random.normal(k1, (4, 16, 16), dtype=jnp.float32)
    img_large = jax.random.normal(k2, (4, 512, 128), dtype=jnp.float32)

    cases = [
        # exercises: fused fast path, per-view fast path, row-tiled fallback
        (img_small, dict(n_views=2, overlap=False, horizontal=True, valid_views=None)),
        (img_small, dict(n_views=3, overlap=True, horizontal=True, valid_views=[0, 2])),
        (img_small, dict(n_views=2, overlap=False, horizontal=False, valid_views=None)),
        (img_large, dict(n_views=4, overlap=False, horizontal=True, valid_views=None)),
        (img_large, dict(n_views=4, overlap=True, horizontal=True, valid_views=[1, 3],
                         fuse=False)),
        (img_large, dict(n_views=4, overlap=False, horizontal=False, valid_views=None)),
    ]

    for img, cfg in cases:
        cfg = dict(cfg)
        fuse = cfg.pop("fuse", None)
        out = multi_crop(img, fuse=fuse, **cfg)
        ref = _reference_multi_crop(img, **cfg)
        assert len(out) == len(ref)
        for o, r in zip(out, ref):
            o = jax.block_until_ready(o)
            assert o.shape == r.shape, (o.shape, r.shape)
            assert o.dtype == r.dtype
            assert jnp.array_equal(o, r), f"mismatch for cfg={cfg}"

    print("KERNEL_OK")
</pallas_src>

<mosaic_0001>
module attributes {stable_mosaic.version = 11 : i64} {
  func.func @_copy_kernel_prefetch(%arg0: i32, %arg1: i32, %arg2: i32, %arg3: memref<2xi32, #tpu.memory_space<smem>>, %arg4: memref<4x128xf32, #tpu.memory_space<vmem>>, %arg5: memref<1x4x128xf32, #tpu.memory_space<vmem>>) attributes {dimension_semantics = [#tpu.dimension_semantics<parallel>, #tpu.dimension_semantics<parallel>, #tpu.dimension_semantics<parallel>], iteration_bounds = array<i64: 2, 1, 1>, scalar_prefetch = 1 : i64, scratch_operands = 0 : i64, tpu.core_type = #tpu.core_type<tc>, window_params = [{transform_indices = @transform_0, window_bounds = array<i64: 4, 128>}, {transform_indices = @transform_1, window_bounds = array<i64: 1, 4, 128>}]} {
    %c0 = arith.constant 0 : index
    %c0_0 = arith.constant 0 : index
    %0 = vector.load %arg4[%c0, %c0_0] : memref<4x128xf32, #tpu.memory_space<vmem>>, vector<4x128xf32>
    %c0_1 = arith.constant 0 : index
    %c0_2 = arith.constant 0 : index
    %c0_3 = arith.constant 0 : index
    %1 = vector.load %arg5[%c0_1, %c0_2, %c0_3] : memref<1x4x128xf32, #tpu.memory_space<vmem>>, vector<1x4x128xf32>
    %2 = vector.shape_cast %1 : vector<1x4x128xf32> to vector<4x128xf32>
    %3 = vector.shape_cast %0 : vector<4x128xf32> to vector<1x4x128xf32>
    tpu.vector_store %arg5[%c0_1, %c0_2, %c0_3], %3 {strides = array<i32>} : memref<1x4x128xf32, #tpu.memory_space<vmem>>, vector<1x4x128xf32>,
    return
  }
  func.func @transform_0(%arg0: i32, %arg1: i32, %arg2: i32, %arg3: memref<2xi32, #tpu.memory_space<smem>>) -> (i32, i32) {
    %0 = arith.index_cast %arg0 : i32 to index
    %1 = memref.load %arg3[%0] : memref<2xi32, #tpu.memory_space<smem>>
    %2 = arith.addi %1, %arg2 : i32
    %c0_i32 = arith.constant 0 : i32
    return %arg1, %2 : i32, i32
  }
  func.func @transform_1(%arg0: i32, %arg1: i32, %arg2: i32, %arg3: memref<2xi32, #tpu.memory_space<smem>>) -> (i32, i32, i32) {
    %c0_i32 = arith.constant 0 : i32
    return %arg0, %arg1, %arg2 : i32, i32, i32
  }
}

</mosaic_0001>

<llo_original>
// kernel: tpu_custom_call.1
$region0: #{tpu_custom_call.1}
  #allocation0 [shape = 'u32[]', space=smem, size = 0x4, offset = 0x4, fixed_abs, tag = 'smem constant byte address 0x4 - core index']
  #allocation1 [shape = 'u32[144,128]{1,0:T(1,128)}', space=vmem, size = 0x12000, scoped, tag = 'internal scratch']
  #allocation2 [shape = 's32[1]{0}', space=sflag, size = 0x4, scoped, tag = 'scoped memory for tpu_custom_call.1']
  #allocation3 [shape = 'u8[512]{0}', space=smem, size = 0x200, scoped, tag = 'prefetched SMEM operand 0']
  %s0 = inlined_call_operand.hbm [shape: s32[2], index: 0, kind: input, shape index: {}]
  %s1 = inlined_call_operand.hbm [shape: f32[4,256], index: 1, kind: input, shape index: {}]
  %s2 = inlined_call_operand.hbm [shape: f32[2,4,128], index: 2, kind: output, shape index: {}]
  %s3 = sld [smem:[#allocation0]]
  $region41: #{tpu_custom_call.1} parent=0
    _
  %s5 = ssub.s32 1, %s3
  %s6 = scalar_select 0, %s5, %s3
  %8 = dma.hbm_to_smem %s0, 16, [#allocation3], [#allocation2]
  %9 = dma.done [#allocation2], 16
  %10 = sfence
  $region1: #{tpu_custom_call.1} parent=0
    #allocation4 [shape = 'u8[4096]{0}', space=vmem, size = 0x1000, scoped, tag = 'input window, operand 1']
    #allocation5 [shape = 's32[2]{0}', space=sflag, size = 0x8, scoped, tag = 'scoped memory for tpu_custom_call.1']
    #allocation6 [shape = 's32[2]{0}', space=sflag, size = 0x8, scoped, tag = 'scoped memory for tpu_custom_call.1']
    #allocation7 [shape = 'u8[4096]{0}', space=vmem, size = 0x1000, scoped, tag = 'output window, operand 0']
    %11 = vsyncpa [#allocation5], 0
    %s12 = scalar_lea.sflag [#allocation5], 1
    %13 = vsyncpa %s12, 0
    %14 = vsyncpa [#allocation6], 0
    %s15 = scalar_lea.sflag [#allocation6], 1
    %16 = vsyncpa %s15, 0
    loop: start=0, step=1, limit=4
    $region2: #{tpu_custom_call.1} parent=1 // loop_pre_header
      _
    $region3: #{tpu_custom_call.1} parent=1 // loop_header
      %s18 = sphi 0, %s22
      %p19 = scmp.ge.s32.totalorder %s18, 4
      %s25 = sphi 0, %s44
      %s26 = sphi 0, %s40
      %s27 = sphi 0, %s36
      %s28 = sphi 0, %s25
      %s29 = sphi 0, %s26
      %s30 = sphi 0, %s27
      %s31 = sphi 0, %s28
      %s32 = sphi 0, %s29
      %s33 = sphi 0, %s30
      %s53 = sphi 0, %s55
      %s56 = sphi 0, %s53
      %s57 = sphi 0, %s56
      %s73 = sphi 0, %s57
      %s83 = sphi 0, %s85
      %s86 = sphi 0, %s83
      %s87 = sphi 0, %s86
      %s103 = sphi 0, %s87
    $region4: #{tpu_custom_call.1} parent=1 // loop_header_branch
      %21 = sbr.rel (%p19) target = $region8
    $region5: #{tpu_custom_call.1} parent=1 // loop_body
      %s23 = ssub.s32 %s18, 1
      %s24 = ssub.s32 %s18, 2
      %s34 = sadd.s32 1, %s27
      %p35 = scmp.ge.s32.totalorder %s34, 1
      %s36 = scalar_select %p35, 0, %s34
      %s37 = sadd.s32 1, %s26
      %s38 = scalar_select %p35, %s37, %s26
      %p39 = scmp.ge.s32.totalorder %s38, 1
      %s40 = scalar_select %p39, 0, %s38
      %s41 = sadd.s32 1, %s25
      %s42 = scalar_select %p39, %s41, %s25
      %p43 = scmp.ge.s32.totalorder %s42, 2
      %s44 = scalar_select %p43, 0, %s42
      %s45 = sld [smem:[#allocation3 + %s25]]
      %s46 = sadd.s32 %s45, %s27
      %s47 = sld [smem:[#allocation3 + %s44]]
      %s48 = sadd.s32 %s47, %s36
      %s49 = ssub.s32 %s26, %s40
      %s50 = ssub.s32 %s46, %s48
      %s51 = sor.u32 %s49, %s50
      %p52 = scmp.eq.s32.totalorder %s51, 0
      %s54 = sadd.s32 %s53, 1
      %s55 = scalar_select %p52, %s53, %s54
      %p58 = pneg %p52
      %p59 = scmp.eq.s32.totalorder %s18, 1
      %p60 = por %p58, %p59
      %p61 = scmp.ne.s32.totalorder %s53, %s56
      %p62 = scmp.eq.s32.totalorder %s18, 0
      %p63 = por %p61, %p62
      %p64 = scmp.ne.s32.totalorder %s53, %s56
      %p65 = scmp.eq.s32.totalorder %s23, 1
      %p66 = por %p64, %p65
      %p67 = scmp.ne.s32.totalorder %s56, %s57
      %p68 = scmp.eq.s32.totalorder %s23, 0
      %p69 = por %p67, %p68
      %p70 = scmp.ne.s32.totalorder %s56, %s57
      %p71 = scmp.eq.s32.totalorder %s24, 1
      %p72 = por %p70, %p71
      %p74 = scmp.ne.s32.totalorder %s57, %s73
      %p75 = scmp.eq.s32.totalorder %s24, 0
      %p76 = por %p74, %p75
      %s77 = ssub.s32 %s25, %s44
      %s78 = ssub.s32 %s26, %s40
      %s79 = sor.u32 %s77, %s78
      %s80 = ssub.s32 %s27, %s36
      %s81 = sor.u32 %s79, %s80
      %p82 = scmp.eq.s32.totalorder %s81, 0
      %s84 = sadd.s32 %s83, 1
      %s85 = scalar_select %p82, %s83, %s84
      %p88 = pneg %p82
      %p89 = scmp.eq.s32.totalorder %s18, 1
      %p90 = por %p88, %p89
      %p91 = scmp.ne.s32.totalorder %s83, %s86
      %p92 = scmp.eq.s32.totalorder %s18, 0
      %p93 = por %p91, %p92
      %p94 = scmp.ne.s32.totalorder %s83, %s86
      %p95 = scmp.eq.s32.totalorder %s23, 1
      %p96 = por %p94, %p95
      %p97 = scmp.ne.s32.totalorder %s86, %s87
      %p98 = scmp.eq.s32.totalorder %s23, 0
      %p99 = por %p97, %p98
      %p100 = scmp.ne.s32.totalorder %s86, %s87
      %p101 = scmp.eq.s32.totalorder %s24, 1
      %p102 = por %p100, %p101
      %p104 = scmp.ne.s32.totalorder %s87, %s103
      %p105 = scmp.eq.s32.totalorder %s24, 0
      %p106 = por %p104, %p105
      %p107 = scmp.le.s32.totalorder 1, %s18
      %p108 = scmp.lt.s32.totalorder %s18, 3
      %p109 = pnand %p107, %p108
      %p110 = pneg %p109
      // Predicated region
      $region9: #{tpu_custom_call.1} parent=5 // pred_check
        _
      $region10: #{tpu_custom_call.1} parent=5 // pred_check_branch
        %112 = sbr.rel (%p109) target = $region12
      $region11: #{tpu_custom_call.1} parent=5 // pred_region
        %s113 = ssub.s32 %s18, 1
      $region12: #{tpu_custom_call.1} parent=5 // pred_fallthru
        _
      %p114 = scmp.lt.s32.totalorder %s18, 2
      // Predicated region
      $region13: #{tpu_custom_call.1} parent=5 // pred_check
        %p115 = pneg %p114
      $region14: #{tpu_custom_call.1} parent=5 // pred_check_branch
        %117 = sbr.rel (%p115) target = $region16
      $region15: #{tpu_custom_call.1} parent=5 // pred_region
        // Predicated region
        $region17: #{tpu_custom_call.1} parent=15 // pred_check
          %p118 = pneg %p63
        $region18: #{tpu_custom_call.1} parent=15 // pred_check_branch
          %120 = sbr.rel (%p118) target = $region20
        $region19: #{tpu_custom_call.1} parent=15 // pred_region
          %s121 = sand.u32 %s53, 1
          %s122 = scalar_lea.sflag [#allocation5], %s121
          %s123 = sand.u32 %s53, 1
          %s124 = smul.addr %s123, 4
          %s125 = scalar_lea.vmem [#allocation4], %s124
          %s126 = sld [smem:[#allocation3 + %s25]]
          %s127 = sadd.s32 %s126, %s27
          %s129 = ssub.s32 64, 64
          %130 = vsyncadd %s122, %s129
          %s131 = smul.addr %s26, 2
          %s132 = sadd.s32 %s127, %s131
          %s133 = smul.addr %s132, 64
          %s134 = scalar_lea.hbm %s1, %s133
          %s136 = sshll.u32 %s125, 4
          %s137 = int_to_ptr.vmem [resolvable:$true] %s136
          %139 = dma.hbm_to_vmem [thread:$0]  %s134, 64, %s137, %s122
        $region20: #{tpu_custom_call.1} parent=15 // pred_fallthru
          _
      $region16: #{tpu_custom_call.1} parent=5 // pred_fallthru
        _
      %p140 = scmp.le.s32.totalorder 1, %s18
      %p141 = scmp.lt.s32.totalorder %s18, 3
      %p142 = pnand %p140, %p141
      %p143 = pneg %p142
      // Predicated region
      $region21: #{tpu_custom_call.1} parent=5 // pred_check
        _
      $region22: #{tpu_custom_call.1} parent=5 // pred_check_branch
        %145 = sbr.rel (%p142) target = $region24
      $region23: #{tpu_custom_call.1} parent=5 // pred_region
        %s146 = ssub.s32 %s18, 1
        %s147 = sand.u32 %s56, 1
        %s148 = scalar_lea.sflag [#allocation5], %s147
        %s149 = sand.u32 %s56, 1
        %s150 = smul.addr %s149, 4
        %s151 = scalar_lea.vmem [#allocation4], %s150
        // Predicated region
        $region25: #{tpu_custom_call.1} parent=23 // pred_check
          %p152 = pneg %p69
        $region26: #{tpu_custom_call.1} parent=23 // pred_check_branch
          %154 = sbr.rel (%p152) target = $region28
        $region27: #{tpu_custom_call.1} parent=23 // pred_region
          %155 = dma.done %s148, 64
        $region28: #{tpu_custom_call.1} parent=23 // pred_fallthru
          _
        %s156 = sand.u32 %s56, 1
        %s157 = scalar_lea.sflag [#allocation5], %s156
        %s158 = sand.u32 %s56, 1
        %s159 = smul.addr %s158, 4
        %s160 = scalar_lea.vmem [#allocation4], %s159
        %p161 = pneg %p69
        %p162 = pneg %p66
        %p163 = pneg %p99
        %p164 = pneg %p96
        %s165 = sand.u32 %s86, 1
        %s166 = scalar_lea.sflag [#allocation6], %s165
        %s167 = sand.u32 %s86, 1
        %s168 = smul.addr %s167, 4
        %s169 = scalar_lea.vmem [#allocation7], %s168
        %s170 = sld [smem:[#allocation3 + %s28]]
        %s171 = sadd.s32 %s170, %s30
        %v172 = vld [vmem:[%s151] sm:$0xf]
        %173 = vst [vmem:[%s169] sm:$0xf] %v172
        %s174 = sand.u32 %s86, 1
        %s175 = scalar_lea.sflag [#allocation6], %s174
        %s176 = sand.u32 %s86, 1
        %s177 = smul.addr %s176, 4
        %s178 = scalar_lea.vmem [#allocation7], %s177
        // Predicated region
        $region29: #{tpu_custom_call.1} parent=23 // pred_check
          %p179 = pneg %p96
        $region30: #{tpu_custom_call.1} parent=23 // pred_check_branch
          %181 = sbr.rel (%p179) target = $region32
        $region31: #{tpu_custom_call.1} parent=23 // pred_region
          %s183 = ssub.s32 64, 64
          %184 = vsyncadd %s175, %s183
          %s185 = sadd.s32 %s30, %s29
          %s186 = sadd.s32 %s185, %s28
          %s187 = smul.addr %s186, 64
          %s188 = scalar_lea.hbm %s2, %s187
          %s190 = sshll.u32 %s178, 4
          %s191 = int_to_ptr.vmem [resolvable:$true] %s190
          %193 = dma.vmem_to_hbm [thread:$0]  %s191, 64, %s188, %s175
        $region32: #{tpu_custom_call.1} parent=23 // pred_fallthru
          _
      $region24: #{tpu_custom_call.1} parent=5 // pred_fallthru
        _
      %p194 = scmp.le.s32.totalorder 2, %s18
      // Predicated region
      $region33: #{tpu_custom_call.1} parent=5 // pred_check
        %p195 = pneg %p194
      $region34: #{tpu_custom_call.1} parent=5 // pred_check_branch
        %197 = sbr.rel (%p195) target = $region36
      $region35: #{tpu_custom_call.1} parent=5 // pred_region
        %s198 = ssub.s32 %s18, 2
        // Predicated region
        $region37: #{tpu_custom_call.1} parent=35 // pred_check
          %p199 = pneg %p102
        $region38: #{tpu_custom_call.1} parent=35 // pred_check_branch
          %201 = sbr.rel (%p199) target = $region40
        $region39: #{tpu_custom_call.1} parent=35 // pred_region
          %s202 = sand.u32 %s87, 1
          %s203 = scalar_lea.sflag [#allocation6], %s202
          %s204 = sand.u32 %s87, 1
          %s205 = smul.addr %s204, 4
          %s206 = scalar_lea.vmem [#allocation7], %s205
          %207 = dma.done %s203, 64
        $region40: #{tpu_custom_call.1} parent=35 // pred_fallthru
          _
      $region36: #{tpu_custom_call.1} parent=5 // pred_fallthru
        _
    $region6: #{tpu_custom_call.1} parent=1 // loop_footer
      %s22 = sadd.s32 1, %s18
    $region7: #{tpu_custom_call.1} parent=1 // loop_footer_branch
      %17 = sbr.rel target = $region3
    $region8: #{tpu_custom_call.1} parent=1 // loop_exit
      _
    %208 = vsyncpa [#allocation5], 1
    %s209 = scalar_lea.sflag [#allocation5], 1
    %210 = vsyncpa %s209, 1
    %211 = vsyncpa [#allocation6], 1
    %s212 = scalar_lea.sflag [#allocation6], 1
    %213 = vsyncpa %s212, 1

</llo_original>
